<compile_context>
chip_gen: v7x
topology: tpu7x:2x2x1
jax: 0.10.0
libtpu: 0.0.40
codegen_flags: <defaults>
</compile_context>

<pallas_src>
import functools

import jax
import jax.numpy as jnp
from jax.experimental import pallas as pl
from jax.experimental.pallas import tpu as pltpu

_LANE = 128


def _round_up(v, m):
    return ((v + m - 1) // m) * m


def _mlp_kernel(scale_ref,
                x_ref,
                w1_ref, b1_ref,
                w2_ref, b2_ref,
                w3_ref, b3_ref,
                w4_ref, b4_ref,
                w5_ref, b5_ref,
                o_ref):
    """Whole forward pass for one batch tile, batch on the lane axis.

    x_ref:  (d_in, block)   -- X^T tile
    wK_ref: (out, in)       -- torch Linear layout
    bK_ref: (out, 1)
    o_ref:  (d_out, block)
    """
    s = scale_ref[0]  # n * a1 (== 1.0), read from SMEM

    def layer(h, w_ref, b_ref):
        z = jnp.dot(w_ref[...], h, preferred_element_type=jnp.float32)
        return s * (z + b_ref[...])

    h = x_ref[...].astype(jnp.float32)           # (d_in, block)
    h = jnp.tanh(layer(h, w1_ref, b1_ref))       # (H, block)
    h = jnp.tanh(layer(h, w2_ref, b2_ref))
    h = jnp.tanh(layer(h, w3_ref, b3_ref))
    h = jnp.tanh(layer(h, w4_ref, b4_ref))
    o_ref[...] = layer(h, w5_ref, b5_ref).astype(o_ref.dtype)   # no tanh on layer 5


@functools.partial(jax.jit, static_argnames=("block_n",))
def particular_forward(x, params, scale, block_n=512):
    """x: (N, D_in) float32. params: torch-layout weights (out,in), biases (out,1)."""
    n, d_in = x.shape
    hdim = params["w1"].shape[0]
    d_out = params["w5"].shape[0]

    # Choose a lane-aligned batch tile; pad N so the grid divides evenly (ragged OK).
    n_ru = _round_up(n, _LANE)
    block = min(_round_up(block_n, _LANE), n_ru)
    # v7x megacore: keep >= 2 parallel grid steps when the batch allows it.
    if block == n_ru and n_ru >= 2 * _LANE and (n_ru // 2) % _LANE == 0:
        block = n_ru // 2
    n_pad = _round_up(n, block)
    grid = (n_pad // block,)

    # Transposed, zero-padded input: (d_in, n_pad). Batch -> lanes.
    x_t = jnp.pad(jnp.transpose(x), ((0, 0), (0, n_pad - n)))

    def const_spec(shape):
        # Whole array, same block every grid step (never re-fetched after step 0).
        return pl.BlockSpec(shape, lambda i: tuple(0 for _ in shape))

    in_specs = [
        pl.BlockSpec(memory_space=pltpu.MemorySpace.SMEM),   # scale (scalar path)
        pl.BlockSpec((d_in, block), lambda i: (0, i)),       # X^T tile
        const_spec((hdim, d_in)),  const_spec((hdim, 1)),    # layer 1
        const_spec((hdim, hdim)),  const_spec((hdim, 1)),    # layer 2
        const_spec((hdim, hdim)),  const_spec((hdim, 1)),    # layer 3
        const_spec((hdim, hdim)),  const_spec((hdim, 1)),    # layer 4
        const_spec((d_out, hdim)), const_spec((d_out, 1)),   # layer 5
    ]
    out_spec = pl.BlockSpec((d_out, block), lambda i: (0, i))

    y_t = pl.pallas_call(
        _mlp_kernel,
        out_shape=jax.ShapeDtypeStruct((d_out, n_pad), jnp.float32),
        grid=grid,
        in_specs=in_specs,
        out_specs=out_spec,
        compiler_params=pltpu.CompilerParams(
            dimension_semantics=("parallel",)),
    )(scale, x_t,
      params["w1"], params["b1"],
      params["w2"], params["b2"],
      params["w3"], params["b3"],
      params["w4"], params["b4"],
      params["w5"], params["b5"])

    # Drop the padded tail and return (N, D_out), matching the torch module.
    return jnp.transpose(y_t[:, :n])


def init_params(key, d_in, h, d_out):
    """Deterministic init matching the torch module's normal_ inits.

    Weights kept in torch Linear layout (out, in); biases as (out, 1) so they
    broadcast along the lane (batch) axis inside the kernel.
    """
    ks = jax.random.split(key, 10)

    def w(k, fan_out, fan_in, std):
        return jax.random.normal(k, (fan_out, fan_in), jnp.float32) * std

    def b(k, fan_out):
        return jax.random.normal(k, (fan_out, 1), jnp.float32)  # std = 1

    params = {
        "w1": w(ks[0], h, d_in, jnp.sqrt(2.0 / (d_in + h))),   "b1": b(ks[1], h),
        "w2": w(ks[2], h, h,    jnp.sqrt(2.0 / (h + h))),      "b2": b(ks[3], h),
        "w3": w(ks[4], h, h,    jnp.sqrt(2.0 / (h + h))),      "b3": b(ks[5], h),
        "w4": w(ks[6], h, h,    jnp.sqrt(2.0 / (h + h))),      "b4": b(ks[7], h),
        "w5": w(ks[8], d_out, h, jnp.sqrt(2.0 / (h + d_out))), "b5": b(ks[9], d_out),
    }
    return params


def reference_forward(x, params, s):
    """Pure-JAX reference of the torch forward."""
    def lin(h, w, b):
        return h @ w.T + b[:, 0]
    y1 = jnp.tanh(s * lin(x, params["w1"], params["b1"]))
    y2 = jnp.tanh(s * lin(y1, params["w2"], params["b2"]))
    y3 = jnp.tanh(s * lin(y2, params["w3"], params["b3"]))
    y4 = jnp.tanh(s * lin(y3, params["w4"], params["b4"]))
    return s * lin(y4, params["w5"], params["b5"])


if __name__ == "__main__":
    D_IN, H, D_OUT = 4, 32, 4
    N = 500  # ragged batch: exercises padding + 2-step grid

    key = jax.random.PRNGKey(0)
    k_x, k_p = jax.random.split(key)

    x = jax.random.normal(k_x, (N, D_IN), jnp.float32)
    params = init_params(k_p, D_IN, H, D_OUT)

    a1 = jnp.float32(0.1)
    n_coef = 1.0 / a1
    scale = jnp.array([n_coef * a1], dtype=jnp.float32)  # == 1.0, kept for fidelity

    y = particular_forward(x, params, scale, block_n=512)
    y = jax.block_until_ready(y)

    y_ref = reference_forward(x, params, float(scale[0]))
    assert y.shape == (N, D_OUT)
    assert jnp.allclose(y, y_ref, atol=1e-4, rtol=1e-4), "mismatch vs JAX reference"

    print("KERNEL_OK")
</pallas_src>

<mosaic_0001>
module attributes {stable_mosaic.version = 11 : i64} {
  func.func @_mlp_kernel(%arg0: i32, %arg1: memref<1xf32, #tpu.memory_space<smem>>, %arg2: memref<4x256xf32, #tpu.memory_space<vmem>>, %arg3: memref<32x4xf32, #tpu.memory_space<vmem>>, %arg4: memref<32x1xf32, #tpu.memory_space<vmem>>, %arg5: memref<32x32xf32, #tpu.memory_space<vmem>>, %arg6: memref<32x1xf32, #tpu.memory_space<vmem>>, %arg7: memref<32x32xf32, #tpu.memory_space<vmem>>, %arg8: memref<32x1xf32, #tpu.memory_space<vmem>>, %arg9: memref<32x32xf32, #tpu.memory_space<vmem>>, %arg10: memref<32x1xf32, #tpu.memory_space<vmem>>, %arg11: memref<4x32xf32, #tpu.memory_space<vmem>>, %arg12: memref<4x1xf32, #tpu.memory_space<vmem>>, %arg13: memref<4x256xf32, #tpu.memory_space<vmem>>) attributes {dimension_semantics = [#tpu.dimension_semantics<parallel>], iteration_bounds = array<i64: 2>, scalar_prefetch = 0 : i64, scratch_operands = 0 : i64, tpu.core_type = #tpu.core_type<tc>, window_params = [{transform_indices = @transform_0, window_bounds = array<i64: 1>}, {transform_indices = @transform_1, window_bounds = array<i64: 4, 256>}, {pipeline_mode = #tpu.pipeline_mode<synchronous>, transform_indices = @transform_2, window_bounds = array<i64: 32, 4>}, {pipeline_mode = #tpu.pipeline_mode<synchronous>, transform_indices = @transform_3, window_bounds = array<i64: 32, 1>}, {pipeline_mode = #tpu.pipeline_mode<synchronous>, transform_indices = @transform_4, window_bounds = array<i64: 32, 32>}, {pipeline_mode = #tpu.pipeline_mode<synchronous>, transform_indices = @transform_5, window_bounds = array<i64: 32, 1>}, {pipeline_mode = #tpu.pipeline_mode<synchronous>, transform_indices = @transform_6, window_bounds = array<i64: 32, 32>}, {pipeline_mode = #tpu.pipeline_mode<synchronous>, transform_indices = @transform_7, window_bounds = array<i64: 32, 1>}, {pipeline_mode = #tpu.pipeline_mode<synchronous>, transform_indices = @transform_8, window_bounds = array<i64: 32, 32>}, {pipeline_mode = #tpu.pipeline_mode<synchronous>, transform_indices = @transform_9, window_bounds = array<i64: 32, 1>}, {pipeline_mode = #tpu.pipeline_mode<synchronous>, transform_indices = @transform_10, window_bounds = array<i64: 4, 32>}, {pipeline_mode = #tpu.pipeline_mode<synchronous>, transform_indices = @transform_11, window_bounds = array<i64: 4, 1>}, {transform_indices = @transform_12, window_bounds = array<i64: 4, 256>}]} {
    %c0 = arith.constant 0 : index
    %0 = memref.load %arg1[%c0] : memref<1xf32, #tpu.memory_space<smem>>
    %c0_0 = arith.constant 0 : index
    %c0_1 = arith.constant 0 : index
    %1 = vector.load %arg2[%c0_0, %c0_1] : memref<4x256xf32, #tpu.memory_space<vmem>>, vector<4x256xf32>
    %c0_2 = arith.constant 0 : index
    %c0_3 = arith.constant 0 : index
    %2 = vector.load %arg3[%c0_2, %c0_3] : memref<32x4xf32, #tpu.memory_space<vmem>>, vector<32x4xf32>
    %cst = arith.constant dense<0.000000e+00> : vector<32x256xf32>
    %3 = tpu.matmul %2, %1, %cst {dimension_numbers = #tpu.dot_dimension_numbers<[1], [0], [0], [1], [0, 0, 1, 1], [], []>} : vector<32x4xf32>, vector<4x256xf32>, vector<32x256xf32> -> vector<32x256xf32>
    %c0_4 = arith.constant 0 : index
    %c0_5 = arith.constant 0 : index
    %4 = vector.load %arg4[%c0_4, %c0_5] : memref<32x1xf32, #tpu.memory_space<vmem>>, vector<32x1xf32>
    %5 = vector.broadcast %4 : vector<32x1xf32> to vector<32x256xf32>
    %6 = arith.addf %3, %5 : vector<32x256xf32>
    %7 = vector.broadcast %0 : f32 to vector<32x256xf32>
    %8 = arith.mulf %7, %6 : vector<32x256xf32>
    %9 = math.tanh %8 : vector<32x256xf32>
    %c0_6 = arith.constant 0 : index
    %c0_7 = arith.constant 0 : index
    %10 = vector.load %arg5[%c0_6, %c0_7] : memref<32x32xf32, #tpu.memory_space<vmem>>, vector<32x32xf32>
    %cst_8 = arith.constant dense<0.000000e+00> : vector<32x256xf32>
    %11 = tpu.matmul %10, %9, %cst_8 {dimension_numbers = #tpu.dot_dimension_numbers<[1], [0], [0], [1], [0, 0, 1, 1], [], []>} : vector<32x32xf32>, vector<32x256xf32>, vector<32x256xf32> -> vector<32x256xf32>
    %c0_9 = arith.constant 0 : index
    %c0_10 = arith.constant 0 : index
    %12 = vector.load %arg6[%c0_9, %c0_10] : memref<32x1xf32, #tpu.memory_space<vmem>>, vector<32x1xf32>
    %13 = vector.broadcast %12 : vector<32x1xf32> to vector<32x256xf32>
    %14 = arith.addf %11, %13 : vector<32x256xf32>
    %15 = vector.broadcast %0 : f32 to vector<32x256xf32>
    %16 = arith.mulf %15, %14 : vector<32x256xf32>
    %17 = math.tanh %16 : vector<32x256xf32>
    %c0_11 = arith.constant 0 : index
    %c0_12 = arith.constant 0 : index
    %18 = vector.load %arg7[%c0_11, %c0_12] : memref<32x32xf32, #tpu.memory_space<vmem>>, vector<32x32xf32>
    %cst_13 = arith.constant dense<0.000000e+00> : vector<32x256xf32>
    %19 = tpu.matmul %18, %17, %cst_13 {dimension_numbers = #tpu.dot_dimension_numbers<[1], [0], [0], [1], [0, 0, 1, 1], [], []>} : vector<32x32xf32>, vector<32x256xf32>, vector<32x256xf32> -> vector<32x256xf32>
    %c0_14 = arith.constant 0 : index
    %c0_15 = arith.constant 0 : index
    %20 = vector.load %arg8[%c0_14, %c0_15] : memref<32x1xf32, #tpu.memory_space<vmem>>, vector<32x1xf32>
    %21 = vector.broadcast %20 : vector<32x1xf32> to vector<32x256xf32>
    %22 = arith.addf %19, %21 : vector<32x256xf32>
    %23 = vector.broadcast %0 : f32 to vector<32x256xf32>
    %24 = arith.mulf %23, %22 : vector<32x256xf32>
    %25 = math.tanh %24 : vector<32x256xf32>
    %c0_16 = arith.constant 0 : index
    %c0_17 = arith.constant 0 : index
    %26 = vector.load %arg9[%c0_16, %c0_17] : memref<32x32xf32, #tpu.memory_space<vmem>>, vector<32x32xf32>
    %cst_18 = arith.constant dense<0.000000e+00> : vector<32x256xf32>
    %27 = tpu.matmul %26, %25, %cst_18 {dimension_numbers = #tpu.dot_dimension_numbers<[1], [0], [0], [1], [0, 0, 1, 1], [], []>} : vector<32x32xf32>, vector<32x256xf32>, vector<32x256xf32> -> vector<32x256xf32>
    %c0_19 = arith.constant 0 : index
    %c0_20 = arith.constant 0 : index
    %28 = vector.load %arg10[%c0_19, %c0_20] : memref<32x1xf32, #tpu.memory_space<vmem>>, vector<32x1xf32>
    %29 = vector.broadcast %28 : vector<32x1xf32> to vector<32x256xf32>
    %30 = arith.addf %27, %29 : vector<32x256xf32>
    %31 = vector.broadcast %0 : f32 to vector<32x256xf32>
    %32 = arith.mulf %31, %30 : vector<32x256xf32>
    %33 = math.tanh %32 : vector<32x256xf32>
    %c0_21 = arith.constant 0 : index
    %c0_22 = arith.constant 0 : index
    %34 = vector.load %arg11[%c0_21, %c0_22] : memref<4x32xf32, #tpu.memory_space<vmem>>, vector<4x32xf32>
    %cst_23 = arith.constant dense<0.000000e+00> : vector<4x256xf32>
    %35 = tpu.matmul %34, %33, %cst_23 {dimension_numbers = #tpu.dot_dimension_numbers<[1], [0], [0], [1], [0, 0, 1, 1], [], []>} : vector<4x32xf32>, vector<32x256xf32>, vector<4x256xf32> -> vector<4x256xf32>
    %c0_24 = arith.constant 0 : index
    %c0_25 = arith.constant 0 : index
    %36 = vector.load %arg12[%c0_24, %c0_25] : memref<4x1xf32, #tpu.memory_space<vmem>>, vector<4x1xf32>
    %37 = vector.broadcast %36 : vector<4x1xf32> to vector<4x256xf32>
    %38 = arith.addf %35, %37 : vector<4x256xf32>
    %39 = vector.broadcast %0 : f32 to vector<4x256xf32>
    %40 = arith.mulf %39, %38 : vector<4x256xf32>
    %c0_26 = arith.constant 0 : index
    %c0_27 = arith.constant 0 : index
    %41 = vector.load %arg13[%c0_26, %c0_27] : memref<4x256xf32, #tpu.memory_space<vmem>>, vector<4x256xf32>
    tpu.vector_store %arg13[%c0_26, %c0_27], %40 {strides = array<i32>} : memref<4x256xf32, #tpu.memory_space<vmem>>, vector<4x256xf32>,
    return
  }
  func.func @transform_0(%arg0: i32) -> i32 {
    %c0_i32 = arith.constant 0 : i32
    %c0_i32_0 = arith.constant 0 : i32
    return %c0_i32 : i32
  }
  func.func @transform_1(%arg0: i32) -> (i32, i32) {
    %c0_i32 = arith.constant 0 : i32
    %c0_i32_0 = arith.constant 0 : i32
    return %c0_i32, %arg0 : i32, i32
  }
  func.func @transform_2(%arg0: i32) -> (i32, i32) {
    %c0_i32 = arith.constant 0 : i32
    %c0_i32_0 = arith.constant 0 : i32
    %c0_i32_1 = arith.constant 0 : i32
    return %c0_i32, %c0_i32_0 : i32, i32
  }
  func.func @transform_3(%arg0: i32) -> (i32, i32) {
    %c0_i32 = arith.constant 0 : i32
    %c0_i32_0 = arith.constant 0 : i32
    %c0_i32_1 = arith.constant 0 : i32
    return %c0_i32, %c0_i32_0 : i32, i32
  }
  func.func @transform_4(%arg0: i32) -> (i32, i32) {
    %c0_i32 = arith.constant 0 : i32
    %c0_i32_0 = arith.constant 0 : i32
    %c0_i32_1 = arith.constant 0 : i32
    return %c0_i32, %c0_i32_0 : i32, i32
  }
  func.func @transform_5(%arg0: i32) -> (i32, i32) {
    %c0_i32 = arith.constant 0 : i32
    %c0_i32_0 = arith.constant 0 : i32
    %c0_i32_1 = arith.constant 0 : i32
    return %c0_i32, %c0_i32_0 : i32, i32
  }
  func.func @transform_6(%arg0: i32) -> (i32, i32) {
    %c0_i32 = arith.constant 0 : i32
    %c0_i32_0 = arith.constant 0 : i32
    %c0_i32_1 = arith.constant 0 : i32
    return %c0_i32, %c0_i32_0 : i32, i32
  }
  func.func @transform_7(%arg0: i32) -> (i32, i32) {
    %c0_i32 = arith.constant 0 : i32
    %c0_i32_0 = arith.constant 0 : i32
    %c0_i32_1 = arith.constant 0 : i32
    return %c0_i32, %c0_i32_0 : i32, i32
  }
  func.func @transform_8(%arg0: i32) -> (i32, i32) {
    %c0_i32 = arith.constant 0 : i32
    %c0_i32_0 = arith.constant 0 : i32
    %c0_i32_1 = arith.constant 0 : i32
    return %c0_i32, %c0_i32_0 : i32, i32
  }
  func.func @transform_9(%arg0: i32) -> (i32, i32) {
    %c0_i32 = arith.constant 0 : i32
    %c0_i32_0 = arith.constant 0 : i32
    %c0_i32_1 = arith.constant 0 : i32
    return %c0_i32, %c0_i32_0 : i32, i32
  }
  func.func @transform_10(%arg0: i32) -> (i32, i32) {
    %c0_i32 = arith.constant 0 : i32
    %c0_i32_0 = arith.constant 0 : i32
    %c0_i32_1 = arith.constant 0 : i32
    return %c0_i32, %c0_i32_0 : i32, i32
  }
  func.func @transform_11(%arg0: i32) -> (i32, i32) {
    %c0_i32 = arith.constant 0 : i32
    %c0_i32_0 = arith.constant 0 : i32
    %c0_i32_1 = arith.constant 0 : i32
    return %c0_i32, %c0_i32_0 : i32, i32
  }
  func.func @transform_12(%arg0: i32) -> (i32, i32) {
    %c0_i32 = arith.constant 0 : i32
    %c0_i32_0 = arith.constant 0 : i32
    return %c0_i32, %arg0 : i32, i32
  }
}

</mosaic_0001>

<llo_original>
// kernel: particular_forward.1
$region0: #{particular_forward.1}
  #allocation0 [shape = 'u32[]', space=smem, size = 0x4, offset = 0x4, fixed_abs, tag = 'smem constant byte address 0x4 - core index']
  #allocation1 [shape = 'u32[144,128]{1,0:T(1,128)}', space=vmem, size = 0x12000, scoped, tag = 'internal scratch']
  #allocation2 [shape = 'f32[1]{0:T(128)S(6)}', space=smem, size = 0x200, scoped, tag = 'scoped memory for particular_forward.1']
  %s0 = inlined_call_operand.<no memory space> [shape: f32[1], index: 0, kind: input, shape index: {}]
  %s1 = inlined_call_operand.vmem [shape: f32[4,512], index: 1, kind: input, shape index: {}]
  %s2 = inlined_call_operand.vmem [shape: f32[32,4], index: 2, kind: input, shape index: {}]
  %s3 = inlined_call_operand.vmem [shape: f32[32,1], index: 3, kind: input, shape index: {}]
  %s4 = inlined_call_operand.vmem [shape: f32[32,32], index: 4, kind: input, shape index: {}]
  %s5 = inlined_call_operand.vmem [shape: f32[32,1], index: 5, kind: input, shape index: {}]
  %s6 = inlined_call_operand.vmem [shape: f32[32,32], index: 6, kind: input, shape index: {}]
  %s7 = inlined_call_operand.vmem [shape: f32[32,1], index: 7, kind: input, shape index: {}]
  %s8 = inlined_call_operand.vmem [shape: f32[32,32], index: 8, kind: input, shape index: {}]
  %s9 = inlined_call_operand.vmem [shape: f32[32,1], index: 9, kind: input, shape index: {}]
  %s10 = inlined_call_operand.vmem [shape: f32[4,32], index: 10, kind: input, shape index: {}]
  %s11 = inlined_call_operand.vmem [shape: f32[4,1], index: 11, kind: input, shape index: {}]
  %s12 = inlined_call_operand.vmem [shape: f32[4,512], index: 12, kind: output, shape index: {}]
  %s13 = sld [smem:[#allocation0]]
  $region81: #{particular_forward.1} parent=0
    _
  %s15 = ssub.s32 1, %s13
  %s16 = scalar_select 0, %s15, %s13
  %17 = sst [smem:[#allocation2]] %s0
  loop: start=0, step=1, limit=4
  $region2: #{particular_forward.1} parent=0 // loop_pre_header
    _
  $region3: #{particular_forward.1} parent=0 // loop_header
    %s19 = sphi 0, %s23
    %p20 = scmp.ge.s32.totalorder %s19, 4
    %s27 = sphi 0, %s27
    %s29 = sphi 0, %s27
    %s30 = sphi 0, %s29
    %s44 = sphi 0, %s30
    %s50 = sphi 0, %s52
    %s53 = sphi 0, %s50
    %s54 = sphi 0, %s53
    %s70 = sphi 0, %s54
    %s74 = sphi 0, %s74
    %s76 = sphi 0, %s74
    %s77 = sphi 0, %s76
    %s91 = sphi 0, %s77
    %s95 = sphi 0, %s95
    %s97 = sphi 0, %s95
    %s98 = sphi 0, %s97
    %s112 = sphi 0, %s98
    %s116 = sphi 0, %s116
    %s118 = sphi 0, %s116
    %s119 = sphi 0, %s118
    %s133 = sphi 0, %s119
    %s137 = sphi 0, %s137
    %s139 = sphi 0, %s137
    %s140 = sphi 0, %s139
    %s154 = sphi 0, %s140
    %s158 = sphi 0, %s158
    %s160 = sphi 0, %s158
    %s161 = sphi 0, %s160
    %s175 = sphi 0, %s161
    %s179 = sphi 0, %s179
    %s181 = sphi 0, %s179
    %s182 = sphi 0, %s181
    %s196 = sphi 0, %s182
    %s200 = sphi 0, %s200
    %s202 = sphi 0, %s200
    %s203 = sphi 0, %s202
    %s217 = sphi 0, %s203
    %s221 = sphi 0, %s221
    %s223 = sphi 0, %s221
    %s224 = sphi 0, %s223
    %s238 = sphi 0, %s224
    %s242 = sphi 0, %s242
    %s244 = sphi 0, %s242
    %s245 = sphi 0, %s244
    %s259 = sphi 0, %s245
    %s263 = sphi 0, %s263
    %s265 = sphi 0, %s263
    %s266 = sphi 0, %s265
    %s280 = sphi 0, %s266
    %s286 = sphi 0, %s288
    %s289 = sphi 0, %s286
    %s290 = sphi 0, %s289
    %s306 = sphi 0, %s290
  $region4: #{particular_forward.1} parent=0 // loop_header_branch
    %22 = sbr.rel (%p20) target = $region8
  $region5: #{particular_forward.1} parent=0 // loop_body
    %s24 = ssub.s32 %s19, 1
    %s25 = ssub.s32 %s19, 2
    %s26 = sadd.s32 %s19, 1
    %s28 = sadd.s32 %s27, 1
    %p31 = scmp.eq.s32.totalorder %s19, 1
    %p32 = scmp.ne.s32.totalorder %s27, %s29
    %p33 = scmp.eq.s32.totalorder %s19, 0
    %p34 = por %p32, %p33
    %p35 = scmp.ne.s32.totalorder %s27, %s29
    %p36 = scmp.eq.s32.totalorder %s24, 1
    %p37 = por %p35, %p36
    %p38 = scmp.ne.s32.totalorder %s29, %s30
    %p39 = scmp.eq.s32.totalorder %s24, 0
    %p40 = por %p38, %p39
    %p41 = scmp.ne.s32.totalorder %s29, %s30
    %p42 = scmp.eq.s32.totalorder %s25, 1
    %p43 = por %p41, %p42
    %p45 = scmp.ne.s32.totalorder %s30, %s44
    %p46 = scmp.eq.s32.totalorder %s25, 0
    %p47 = por %p45, %p46
    %s48 = ssub.s32 %s19, %s26
    %p49 = scmp.eq.s32.totalorder %s48, 0
    %s51 = sadd.s32 %s50, 1
    %s52 = scalar_select %p49, %s50, %s51
    %p55 = pneg %p49
    %p56 = scmp.eq.s32.totalorder %s19, 1
    %p57 = por %p55, %p56
    %p58 = scmp.ne.s32.totalorder %s50, %s53
    %p59 = scmp.eq.s32.totalorder %s19, 0
    %p60 = por %p58, %p59
    %p61 = scmp.ne.s32.totalorder %s50, %s53
    %p62 = scmp.eq.s32.totalorder %s24, 1
    %p63 = por %p61, %p62
    %p64 = scmp.ne.s32.totalorder %s53, %s54
    %p65 = scmp.eq.s32.totalorder %s24, 0
    %p66 = por %p64, %p65
    %p67 = scmp.ne.s32.totalorder %s53, %s54
    %p68 = scmp.eq.s32.totalorder %s25, 1
    %p69 = por %p67, %p68
    %p71 = scmp.ne.s32.totalorder %s54, %s70
    %p72 = scmp.eq.s32.totalorder %s25, 0
    %p73 = por %p71, %p72
    %s75 = sadd.s32 %s74, 1
    %p78 = scmp.eq.s32.totalorder %s19, 1
    %p79 = scmp.ne.s32.totalorder %s74, %s76
    %p80 = scmp.eq.s32.totalorder %s19, 0
    %p81 = por %p79, %p80
    %p82 = scmp.ne.s32.totalorder %s74, %s76
    %p83 = scmp.eq.s32.totalorder %s24, 1
    %p84 = por %p82, %p83
    %p85 = scmp.ne.s32.totalorder %s76, %s77
    %p86 = scmp.eq.s32.totalorder %s24, 0
    %p87 = por %p85, %p86
    %p88 = scmp.ne.s32.totalorder %s76, %s77
    %p89 = scmp.eq.s32.totalorder %s25, 1
    %p90 = por %p88, %p89
    %p92 = scmp.ne.s32.totalorder %s77, %s91
    %p93 = scmp.eq.s32.totalorder %s25, 0
    %p94 = por %p92, %p93
    %s96 = sadd.s32 %s95, 1
    %p99 = scmp.eq.s32.totalorder %s19, 1
    %p100 = scmp.ne.s32.totalorder %s95, %s97
    %p101 = scmp.eq.s32.totalorder %s19, 0
    %p102 = por %p100, %p101
    %p103 = scmp.ne.s32.totalorder %s95, %s97
    %p104 = scmp.eq.s32.totalorder %s24, 1
    %p105 = por %p103, %p104
    %p106 = scmp.ne.s32.totalorder %s97, %s98
    %p107 = scmp.eq.s32.totalorder %s24, 0
    %p108 = por %p106, %p107
    %p109 = scmp.ne.s32.totalorder %s97, %s98
    %p110 = scmp.eq.s32.totalorder %s25, 1
    %p111 = por %p109, %p110
    %p113 = scmp.ne.s32.totalorder %s98, %s112
    %p114 = scmp.eq.s32.totalorder %s25, 0
    %p115 = por %p113, %p114
    %s117 = sadd.s32 %s116, 1
    %p120 = scmp.eq.s32.totalorder %s19, 1
    %p121 = scmp.ne.s32.totalorder %s116, %s118
    %p122 = scmp.eq.s32.totalorder %s19, 0
    %p123 = por %p121, %p122
    %p124 = scmp.ne.s32.totalorder %s116, %s118
    %p125 = scmp.eq.s32.totalorder %s24, 1
    %p126 = por %p124, %p125
    %p127 = scmp.ne.s32.totalorder %s118, %s119
    %p128 = scmp.eq.s32.totalorder %s24, 0
    %p129 = por %p127, %p128
    %p130 = scmp.ne.s32.totalorder %s118, %s119
    %p131 = scmp.eq.s32.totalorder %s25, 1
    %p132 = por %p130, %p131
    %p134 = scmp.ne.s32.totalorder %s119, %s133
    %p135 = scmp.eq.s32.totalorder %s25, 0
    %p136 = por %p134, %p135
    %s138 = sadd.s32 %s137, 1
    %p141 = scmp.eq.s32.totalorder %s19, 1
    %p142 = scmp.ne.s32.totalorder %s137, %s139
    %p143 = scmp.eq.s32.totalorder %s19, 0
    %p144 = por %p142, %p143
    %p145 = scmp.ne.s32.totalorder %s137, %s139
    %p146 = scmp.eq.s32.totalorder %s24, 1
    %p147 = por %p145, %p146
    %p148 = scmp.ne.s32.totalorder %s139, %s140
    %p149 = scmp.eq.s32.totalorder %s24, 0
    %p150 = por %p148, %p149
    %p151 = scmp.ne.s32.totalorder %s139, %s140
    %p152 = scmp.eq.s32.totalorder %s25, 1
    %p153 = por %p151, %p152
    %p155 = scmp.ne.s32.totalorder %s140, %s154
    %p156 = scmp.eq.s32.totalorder %s25, 0
    %p157 = por %p155, %p156
    %s159 = sadd.s32 %s158, 1
    %p162 = scmp.eq.s32.totalorder %s19, 1
    %p163 = scmp.ne.s32.totalorder %s158, %s160
    %p164 = scmp.eq.s32.totalorder %s19, 0
    %p165 = por %p163, %p164
    %p166 = scmp.ne.s32.totalorder %s158, %s160
    %p167 = scmp.eq.s32.totalorder %s24, 1
    %p168 = por %p166, %p167
    %p169 = scmp.ne.s32.totalorder %s160, %s161
    %p170 = scmp.eq.s32.totalorder %s24, 0
    %p171 = por %p169, %p170
    %p172 = scmp.ne.s32.totalorder %s160, %s161
    %p173 = scmp.eq.s32.totalorder %s25, 1
    %p174 = por %p172, %p173
    %p176 = scmp.ne.s32.totalorder %s161, %s175
    %p177 = scmp.eq.s32.totalorder %s25, 0
    %p178 = por %p176, %p177
    %s180 = sadd.s32 %s179, 1
    %p183 = scmp.eq.s32.totalorder %s19, 1
    %p184 = scmp.ne.s32.totalorder %s179, %s181
    %p185 = scmp.eq.s32.totalorder %s19, 0
    %p186 = por %p184, %p185
    %p187 = scmp.ne.s32.totalorder %s179, %s181
    %p188 = scmp.eq.s32.totalorder %s24, 1
    %p189 = por %p187, %p188
    %p190 = scmp.ne.s32.totalorder %s181, %s182
    %p191 = scmp.eq.s32.totalorder %s24, 0
    %p192 = por %p190, %p191
    %p193 = scmp.ne.s32.totalorder %s181, %s182
    %p194 = scmp.eq.s32.totalorder %s25, 1
    %p195 = por %p193, %p194
    %p197 = scmp.ne.s32.totalorder %s182, %s196
    %p198 = scmp.eq.s32.totalorder %s25, 0
    %p199 = por %p197, %p198
    %s201 = sadd.s32 %s200, 1
    %p204 = scmp.eq.s32.totalorder %s19, 1
    %p205 = scmp.ne.s32.totalorder %s200, %s202
    %p206 = scmp.eq.s32.totalorder %s19, 0
    %p207 = por %p205, %p206
    %p208 = scmp.ne.s32.totalorder %s200, %s202
    %p209 = scmp.eq.s32.totalorder %s24, 1
    %p210 = por %p208, %p209
    %p211 = scmp.ne.s32.totalorder %s202, %s203
    %p212 = scmp.eq.s32.totalorder %s24, 0
    %p213 = por %p211, %p212
    %p214 = scmp.ne.s32.totalorder %s202, %s203
    %p215 = scmp.eq.s32.totalorder %s25, 1
    %p216 = por %p214, %p215
    %p218 = scmp.ne.s32.totalorder %s203, %s217
    %p219 = scmp.eq.s32.totalorder %s25, 0
    %p220 = por %p218, %p219
    %s222 = sadd.s32 %s221, 1
    %p225 = scmp.eq.s32.totalorder %s19, 1
    %p226 = scmp.ne.s32.totalorder %s221, %s223
    %p227 = scmp.eq.s32.totalorder %s19, 0
    %p228 = por %p226, %p227
    %p229 = scmp.ne.s32.totalorder %s221, %s223
    %p230 = scmp.eq.s32.totalorder %s24, 1
    %p231 = por %p229, %p230
    %p232 = scmp.ne.s32.totalorder %s223, %s224
    %p233 = scmp.eq.s32.totalorder %s24, 0
    %p234 = por %p232, %p233
    %p235 = scmp.ne.s32.totalorder %s223, %s224
    %p236 = scmp.eq.s32.totalorder %s25, 1
    %p237 = por %p235, %p236
    %p239 = scmp.ne.s32.totalorder %s224, %s238
    %p240 = scmp.eq.s32.totalorder %s25, 0
    %p241 = por %p239, %p240
    %s243 = sadd.s32 %s242, 1
    %p246 = scmp.eq.s32.totalorder %s19, 1
    %p247 = scmp.ne.s32.totalorder %s242, %s244
    %p248 = scmp.eq.s32.totalorder %s19, 0
    %p249 = por %p247, %p248
    %p250 = scmp.ne.s32.totalorder %s242, %s244
    %p251 = scmp.eq.s32.totalorder %s24, 1
    %p252 = por %p250, %p251
    %p253 = scmp.ne.s32.totalorder %s244, %s245
    %p254 = scmp.eq.s32.totalorder %s24, 0
    %p255 = por %p253, %p254
    %p256 = scmp.ne.s32.totalorder %s244, %s245
    %p257 = scmp.eq.s32.totalorder %s25, 1
    %p258 = por %p256, %p257
    %p260 = scmp.ne.s32.totalorder %s245, %s259
    %p261 = scmp.eq.s32.totalorder %s25, 0
    %p262 = por %p260, %p261
    %s264 = sadd.s32 %s263, 1
    %p267 = scmp.eq.s32.totalorder %s19, 1
    %p268 = scmp.ne.s32.totalorder %s263, %s265
    %p269 = scmp.eq.s32.totalorder %s19, 0
    %p270 = por %p268, %p269
    %p271 = scmp.ne.s32.totalorder %s263, %s265
    %p272 = scmp.eq.s32.totalorder %s24, 1
    %p273 = por %p271, %p272
    %p274 = scmp.ne.s32.totalorder %s265, %s266
    %p275 = scmp.eq.s32.totalorder %s24, 0
    %p276 = por %p274, %p275
    %p277 = scmp.ne.s32.totalorder %s265, %s266
    %p278 = scmp.eq.s32.totalorder %s25, 1
    %p279 = por %p277, %p278
    %p281 = scmp.ne.s32.totalorder %s266, %s280
    %p282 = scmp.eq.s32.totalorder %s25, 0
    %p283 = por %p281, %p282
    %s284 = ssub.s32 %s19, %s26
    %p285 = scmp.eq.s32.totalorder %s284, 0
    %s287 = sadd.s32 %s286, 1
    %s288 = scalar_select %p285, %s286, %s287
    %p291 = pneg %p285
    %p292 = scmp.eq.s32.totalorder %s19, 1
    %p293 = por %p291, %p292
    %p294 = scmp.ne.s32.totalorder %s286, %s289
    %p295 = scmp.eq.s32.totalorder %s19, 0
    %p296 = por %p294, %p295
    %p297 = scmp.ne.s32.totalorder %s286, %s289
    %p298 = scmp.eq.s32.totalorder %s24, 1
    %p299 = por %p297, %p298
    %p300 = scmp.ne.s32.totalorder %s289, %s290
    %p301 = scmp.eq.s32.totalorder %s24, 0
    %p302 = por %p300, %p301
    %p303 = scmp.ne.s32.totalorder %s289, %s290
    %p304 = scmp.eq.s32.totalorder %s25, 1
    %p305 = por %p303, %p304
    %p307 = scmp.ne.s32.totalorder %s290, %s306
    %p308 = scmp.eq.s32.totalorder %s25, 0
    %p309 = por %p307, %p308
    %p310 = scmp.le.s32.totalorder 1, %s19
    %p311 = scmp.lt.s32.totalorder %s19, 3
    %p312 = pnand %p310, %p311
    %p313 = pneg %p312
    // Predicated region
    $region9: #{particular_forward.1} parent=5 // pred_check
      _
    $region10: #{particular_forward.1} parent=5 // pred_check_branch
      %315 = sbr.rel (%p312) target = $region12
    $region11: #{particular_forward.1} parent=5 // pred_region
      %s316 = ssub.s32 %s19, 1
      // Predicated region
      $region13: #{particular_forward.1} parent=11 // pred_check
        %p317 = pneg %p40
      $region14: #{particular_forward.1} parent=11 // pred_check_branch
        %319 = sbr.rel (%p317) target = $region16
      $region15: #{particular_forward.1} parent=11 // pred_region
        _
      $region16: #{particular_forward.1} parent=11 // pred_fallthru
        _
      // Predicated region
      $region17: #{particular_forward.1} parent=11 // pred_check
        %p320 = pneg %p87
      $region18: #{particular_forward.1} parent=11 // pred_check_branch
        %322 = sbr.rel (%p320) target = $region20
      $region19: #{particular_forward.1} parent=11 // pred_region
        _
      $region20: #{particular_forward.1} parent=11 // pred_fallthru
        _
      // Predicated region
      $region21: #{particular_forward.1} parent=11 // pred_check
        %p323 = pneg %p108
      $region22: #{particular_forward.1} parent=11 // pred_check_branch
        %325 = sbr.rel (%p323) target = $region24
      $region23: #{particular_forward.1} parent=11 // pred_region
        _
      $region24: #{particular_forward.1} parent=11 // pred_fallthru
        _
      // Predicated region
      $region25: #{particular_forward.1} parent=11 // pred_check
        %p326 = pneg %p129
      $region26: #{particular_forward.1} parent=11 // pred_check_branch
        %328 = sbr.rel (%p326) target = $region28
      $region27: #{particular_forward.1} parent=11 // pred_region
        _
      $region28: #{particular_forward.1} parent=11 // pred_fallthru
        _
      // Predicated region
      $region29: #{particular_forward.1} parent=11 // pred_check
        %p329 = pneg %p150
      $region30: #{particular_forward.1} parent=11 // pred_check_branch
        %331 = sbr.rel (%p329) target = $region32
      $region31: #{particular_forward.1} parent=11 // pred_region
        _
      $region32: #{particular_forward.1} parent=11 // pred_fallthru
        _
      // Predicated region
      $region33: #{particular_forward.1} parent=11 // pred_check
        %p332 = pneg %p171
      $region34: #{particular_forward.1} parent=11 // pred_check_branch
        %334 = sbr.rel (%p332) target = $region36
      $region35: #{particular_forward.1} parent=11 // pred_region
        _
      $region36: #{particular_forward.1} parent=11 // pred_fallthru
        _
      // Predicated region
      $region37: #{particular_forward.1} parent=11 // pred_check
        %p335 = pneg %p192
      $region38: #{particular_forward.1} parent=11 // pred_check_branch
        %337 = sbr.rel (%p335) target = $region40
      $region39: #{particular_forward.1} parent=11 // pred_region
        _
      $region40: #{particular_forward.1} parent=11 // pred_fallthru
        _
      // Predicated region
      $region41: #{particular_forward.1} parent=11 // pred_check
        %p338 = pneg %p213
      $region42: #{particular_forward.1} parent=11 // pred_check_branch
        %340 = sbr.rel (%p338) target = $region44
      $region43: #{particular_forward.1} parent=11 // pred_region
        _
      $region44: #{particular_forward.1} parent=11 // pred_fallthru
        _
      // Predicated region
      $region45: #{particular_forward.1} parent=11 // pred_check
        %p341 = pneg %p234
      $region46: #{particular_forward.1} parent=11 // pred_check_branch
        %343 = sbr.rel (%p341) target = $region48
      $region47: #{particular_forward.1} parent=11 // pred_region
        _
      $region48: #{particular_forward.1} parent=11 // pred_fallthru
        _
      // Predicated region
      $region49: #{particular_forward.1} parent=11 // pred_check
        %p344 = pneg %p255
      $region50: #{particular_forward.1} parent=11 // pred_check_branch
        %346 = sbr.rel (%p344) target = $region52
      $region51: #{particular_forward.1} parent=11 // pred_region
        _
      $region52: #{particular_forward.1} parent=11 // pred_fallthru
        _
      // Predicated region
      $region53: #{particular_forward.1} parent=11 // pred_check
        %p347 = pneg %p276
      $region54: #{particular_forward.1} parent=11 // pred_check_branch
        %349 = sbr.rel (%p347) target = $region56
      $region55: #{particular_forward.1} parent=11 // pred_region
        _
      $region56: #{particular_forward.1} parent=11 // pred_fallthru
        _
    $region12: #{particular_forward.1} parent=5 // pred_fallthru
      _
    %p350 = scmp.lt.s32.totalorder %s19, 2
    // Predicated region
    $region57: #{particular_forward.1} parent=5 // pred_check
      %p351 = pneg %p350
    $region58: #{particular_forward.1} parent=5 // pred_check_branch
      %353 = sbr.rel (%p351) target = $region60
    $region59: #{particular_forward.1} parent=5 // pred_region
      // Predicated region
      $region61: #{particular_forward.1} parent=59 // pred_check
        %p354 = pneg %p60
      $region62: #{particular_forward.1} parent=59 // pred_check_branch
        %356 = sbr.rel (%p354) target = $region64
      $region63: #{particular_forward.1} parent=59 // pred_region
        %s357 = smul.u32 2, %s19
        %p358 = scmp.lt.s32.totalorder %s357, 3
        %s359 = scalar_select %p358, %s357, 3
        %s360 = smul.addr %s359, 4
        %s361 = scalar_lea.vmem %s1, %s360
        %s362 = smul.u32 2, %s19
      $region64: #{particular_forward.1} parent=59 // pred_fallthru
        _
    $region60: #{particular_forward.1} parent=5 // pred_fallthru
      _
    %p363 = scmp.le.s32.totalorder 1, %s19
    %p364 = scmp.lt.s32.totalorder %s19, 3
    %p365 = pnand %p363, %p364
    %p366 = pneg %p365
    // Predicated region
    $region65: #{particular_forward.1} parent=5 // pred_check
      _
    $region66: #{particular_forward.1} parent=5 // pred_check_branch
      %368 = sbr.rel (%p365) target = $region68
    $region67: #{particular_forward.1} parent=5 // pred_region
      %s369 = ssub.s32 %s19, 1
      %p370 = pneg %p40
      %p371 = pneg %p37
      %s372 = smul.u32 2, %s24
      %p373 = scmp.lt.s32.totalorder %s372, 3
      %s374 = scalar_select %p373, %s372, 3
      %s375 = smul.addr %s374, 4
      %s376 = scalar_lea.vmem %s1, %s375
      %p377 = pneg %p66
      %p378 = pneg %p63
      %p379 = pneg %p87
      %p380 = pneg %p84
      %p381 = pneg %p108
      %p382 = pneg %p105
      %p383 = pneg %p129
      %p384 = pneg %p126
      %p385 = pneg %p150
      %p386 = pneg %p147
      %p387 = pneg %p171
      %p388 = pneg %p168
      %p389 = pneg %p192
      %p390 = pneg %p189
      %p391 = pneg %p213
      %p392 = pneg %p210
      %p393 = pneg %p234
      %p394 = pneg %p231
      %p395 = pneg %p255
      %p396 = pneg %p252
      %p397 = pneg %p276
      %p398 = pneg %p273
      %p399 = pneg %p302
      %p400 = pneg %p299
      %s401 = smul.u32 2, %s24
      %p402 = scmp.lt.s32.totalorder %s401, 3
      %s403 = scalar_select %p402, %s401, 3
      %s404 = smul.addr %s403, 4
      %s405 = scalar_lea.vmem %s12, %s404
      %s406 = smul.u32 2, %s24
      %p407 = scmp.lt.s32.totalorder %s406, 3
      %s408 = scalar_select %p407, %s406, 3
      %s409 = smul.addr %s408, 4
      %s410 = scalar_lea.vmem %s1, %s409
      %s411 = smul.u32 2, %s24
      %s412 = smul.u32 2, %s24
      %p413 = scmp.lt.s32.totalorder %s412, 3
      %s414 = scalar_select %p413, %s412, 3
      %s415 = smul.addr %s414, 4
      %s416 = scalar_lea.vmem %s12, %s415
      %s417 = smul.u32 2, %s24
      %s418 = sld [smem:[#allocation2]]
      %v419 = vld [vmem:[%s410] sm:$0xff]
      %v420 = vld [vmem:[%s2] sm:$0xff]
      %v421 = vld [vmem:[%s2 + $0x8] sm:$0xff]
      %v422 = vld [vmem:[%s2 + $0x10] sm:$0xff]
      %v423 = vld [vmem:[%s2 + $0x18] sm:$0xff]
      %v424 = vld [vmem:[%s3] sm:$0xff]
      %v425 = vld [vmem:[%s3 + $0x8] sm:$0xff]
      %v426 = vld [vmem:[%s3 + $0x10] sm:$0xff]
      %v427 = vld [vmem:[%s3 + $0x18] sm:$0xff]
      %429 = vset.pattern.permute.xlu0 0
      %430 = vperm.xlu0 %429, %v424
      %v431 = vpop.permute.xlu0 %430
      %434 = vset.pattern.permute.xlu0 0
      %435 = vperm.xlu0 %434, %v425
      %v436 = vpop.permute.xlu0 %435
      %439 = vset.pattern.permute.xlu0 0
      %440 = vperm.xlu0 %439, %v426
      %v441 = vpop.permute.xlu0 %440
      %444 = vset.pattern.permute.xlu0 0
      %445 = vperm.xlu0 %444, %v427
      %v446 = vpop.permute.xlu0 %445
      %v449 = vcombine.high %v419, %v419
      %vm450 = vcmask 31744
      %v452 = vsel %vm450, %v420, 0
      %v455 = vsel %vm450, %v421, 0
      %v458 = vsel %vm450, %v422, 0
      %v461 = vsel %vm450, %v423, 0
      %vm463 = vcmask 1043456
      %v464 = vsel %vm463, %v419, 0
      %v466 = vsel %vm463, %v449, 0
      %468 = vmatprep.subr.mxu0 %v466
      %469 = vmatpush1.msra.mxu0 %v464
      %470 = vmatprep.subr.mxu0 0.0
      %471 = vmatpush1.msra.mxu0 0.0
      %472 = vmatprep.subr.mxu0 0.0
      %473 = vmatpush1.msra.mxu0 0.0
      %474 = vmatprep.subr.mxu0 0.0
      %475 = vmatpush1.msra.mxu0 0.0
      %476 = vmatprep.subr.mxu0 0.0
      %477 = vmatpush1.msra.mxu0 0.0
      %478 = vmatprep.subr.mxu0 0.0
      %479 = vmatpush1.msra.mxu0 0.0
      %480 = vmatprep.subr.mxu0 0.0
      %481 = vmatpush1.msra.mxu0 0.0
      %482 = vmatprep.subr.mxu0 0.0
      %483 = vmatpush1.msra.mxu0 0.0
      %484 = vmatprep.subr.mxu0 0.0
      %485 = vmatpush1.msra.mxu0 0.0
      %486 = vmatprep.subr.mxu0 0.0
      %487 = vmatpush1.msra.mxu0 0.0
      %488 = vmatprep.subr.mxu0 0.0
      %489 = vmatpush1.msra.mxu0 0.0
      %490 = vmatprep.subr.mxu0 0.0
      %491 = vmatpush1.msra.mxu0 0.0
      %492 = vmatprep.subr.mxu0 0.0
      %493 = vmatpush1.msra.mxu0 0.0
      %494 = vmatprep.subr.mxu0 0.0
      %495 = vmatpush1.msra.mxu0 0.0
      %496 = vmatprep.subr.mxu0 0.0
      %497 = vmatpush1.msra.mxu0 0.0
      %498 = vmatprep.subr.mxu0 0.0
      %499 = vmatpush1.msra.mxu0 0.0
      %500 = vmatprep.subr.mxu0 0.0
      %501 = vmatpush1.msra.mxu0 0.0
      %502 = vmatprep.subr.mxu0 0.0
      %503 = vmatpush1.msra.mxu0 0.0
      %504 = vmatprep.subr.mxu0 0.0
      %505 = vmatpush1.msra.mxu0 0.0
      %506 = vmatprep.subr.mxu0 0.0
      %507 = vmatpush1.msra.mxu0 0.0
      %508 = vmatprep.subr.mxu0 0.0
      %509 = vmatpush1.msra.mxu0 0.0
      %510 = vmatprep.subr.mxu0 0.0
      %511 = vmatpush1.msra.mxu0 0.0
      %512 = vmatprep.subr.mxu0 0.0
      %513 = vmatpush1.msra.mxu0 0.0
      %514 = vmatprep.subr.mxu0 0.0
      %515 = vmatpush1.msra.mxu0 0.0
      %516 = vmatprep.subr.mxu0 0.0
      %517 = vmatpush1.msra.mxu0 0.0
      %518 = vmatprep.subr.mxu0 0.0
      %519 = vmatpush1.msra.mxu0 0.0
      %520 = vmatprep.subr.mxu0 0.0
      %521 = vmatpush1.msra.mxu0 0.0
      %522 = vmatprep.subr.mxu0 0.0
      %523 = vmatpush1.msra.mxu0 0.0
      %524 = vmatprep.subr.mxu0 0.0
      %525 = vmatpush1.msra.mxu0 0.0
      %526 = vmatprep.subr.mxu0 0.0
      %527 = vmatpush1.msra.mxu0 0.0
      %528 = vmatprep.subr.mxu0 0.0
      %529 = vmatpush1.msra.mxu0 0.0
      %530 = vmatprep.subr.mxu0 0.0
      %531 = vmatpush1.msra.mxu0 0.0
      %532 = vmatprep.mubr.f32.mxu0 0.0
      %533 = vmatmul.mubr.f32.gmra.mrb[0].mxu0 %v452
      %v534 = vpop.f32.mrb[0].mxu0
      %v535 = vadd.f32 %v431, %v534
      %v536 = vpop.f32.mrb[0].mxu0
      %v537 = vadd.f32 %v431, %v536
      %538 = vmatprep.mubr.f32.mxu0 0.0
      %539 = vmatmul.mubr.f32.gmra.mrb[0].mxu0 %v455
      %v540 = vpop.f32.mrb[0].mxu0
      %v541 = vadd.f32 %v436, %v540
      %v542 = vpop.f32.mrb[0].mxu0
      %v543 = vadd.f32 %v436, %v542
      %544 = vmatprep.mubr.f32.mxu0 0.0
      %545 = vmatmul.mubr.f32.gmra.mrb[0].mxu0 %v458
      %v546 = vpop.f32.mrb[0].mxu0
      %v547 = vadd.f32 %v441, %v546
      %v548 = vpop.f32.mrb[0].mxu0
      %v549 = vadd.f32 %v441, %v548
      %550 = vmatprep.mubr.f32.mxu0 0.0
      %551 = vmatmul.mubr.f32.gmra.mrb[0].mxu0 %v461
      %v552 = vpop.f32.mrb[0].mxu0
      %v553 = vadd.f32 %v446, %v552
      %v554 = vpop.f32.mrb[0].mxu0
      %v555 = vadd.f32 %v446, %v554
      %556 = vdwg.mxu0
      %v557 = vstv %s418
      %v558 = vmul.f32 %v557, %v535
      %v559 = vmul.f32 %v557, %v537
      %v560 = vmul.f32 %v557, %v541
      %v561 = vmul.f32 %v557, %v543
      %v562 = vmul.f32 %v557, %v547
      %v563 = vmul.f32 %v557, %v549
      %v564 = vmul.f32 %v557, %v553
      %v565 = vmul.f32 %v557, %v555
      %v566 = vtanh.pop %v558
      %v567 = vtanh.pop %v559
      %v568 = vtanh.pop %v560
      %v569 = vtanh.pop %v561
      %v570 = vtanh.pop %v562
      %v571 = vtanh.pop %v563
      %v572 = vtanh.pop %v564
      %v573 = vtanh.pop %v565
      %v574 = vld [vmem:[%s4] sm:$0xff]
      %v575 = vld [vmem:[%s4 + $0x8] sm:$0xff]
      %v576 = vld [vmem:[%s4 + $0x10] sm:$0xff]
      %v577 = vld [vmem:[%s4 + $0x18] sm:$0xff]
      %v578 = vld [vmem:[%s5] sm:$0xff]
      %v579 = vld [vmem:[%s5 + $0x8] sm:$0xff]
      %v580 = vld [vmem:[%s5 + $0x10] sm:$0xff]
      %v581 = vld [vmem:[%s5 + $0x18] sm:$0xff]
      %583 = vset.pattern.permute.xlu0 0
      %584 = vperm.xlu0 %583, %v578
      %v585 = vpop.permute.xlu0 %584
      %588 = vset.pattern.permute.xlu0 0
      %589 = vperm.xlu0 %588, %v579
      %v590 = vpop.permute.xlu0 %589
      %593 = vset.pattern.permute.xlu0 0
      %594 = vperm.xlu0 %593, %v580
      %v595 = vpop.permute.xlu0 %594
      %598 = vset.pattern.permute.xlu0 0
      %599 = vperm.xlu0 %598, %v581
      %v600 = vpop.permute.xlu0 %599
      %vm602 = vcmask 261120
      %v604 = vsel %vm602, %v574, 0
      %v607 = vsel %vm602, %v575, 0
      %v610 = vsel %vm602, %v576, 0
      %v613 = vsel %vm602, %v577, 0
      %615 = vmatprep.subr.mxu0 %v567
      %616 = vmatpush1.msra.mxu0 %v566
      %617 = vmatprep.subr.mxu0 %v569
      %618 = vmatpush1.msra.mxu0 %v568
      %619 = vmatprep.subr.mxu0 %v571
      %620 = vmatpush1.msra.mxu0 %v570
      %621 = vmatprep.subr.mxu0 %v573
      %622 = vmatpush1.msra.mxu0 %v572
      %623 = vmatprep.subr.mxu0 0.0
      %624 = vmatpush1.msra.mxu0 0.0
      %625 = vmatprep.subr.mxu0 0.0
      %626 = vmatpush1.msra.mxu0 0.0
      %627 = vmatprep.subr.mxu0 0.0
      %628 = vmatpush1.msra.mxu0 0.0
      %629 = vmatprep.subr.mxu0 0.0
      %630 = vmatpush1.msra.mxu0 0.0
      %631 = vmatprep.subr.mxu0 0.0
      %632 = vmatpush1.msra.mxu0 0.0
      %633 = vmatprep.subr.mxu0 0.0
      %634 = vmatpush1.msra.mxu0 0.0
      %635 = vmatprep.subr.mxu0 0.0
      %636 = vmatpush1.msra.mxu0 0.0
      %637 = vmatprep.subr.mxu0 0.0
      %638 = vmatpush1.msra.mxu0 0.0
      %639 = vmatprep.subr.mxu0 0.0
      %640 = vmatpush1.msra.mxu0 0.0
      %641 = vmatprep.subr.mxu0 0.0
      %642 = vmatpush1.msra.mxu0 0.0
      %643 = vmatprep.subr.mxu0 0.0
      %644 = vmatpush1.msra.mxu0 0.0
      %645 = vmatprep.subr.mxu0 0.0
      %646 = vmatpush1.msra.mxu0 0.0
      %647 = vmatprep.subr.mxu0 0.0
      %648 = vmatpush1.msra.mxu0 0.0
      %649 = vmatprep.subr.mxu0 0.0
      %650 = vmatpush1.msra.mxu0 0.0
      %651 = vmatprep.subr.mxu0 0.0
      %652 = vmatpush1.msra.mxu0 0.0
      %653 = vmatprep.subr.mxu0 0.0
      %654 = vmatpush1.msra.mxu0 0.0
      %655 = vmatprep.subr.mxu0 0.0
      %656 = vmatpush1.msra.mxu0 0.0
      %657 = vmatprep.subr.mxu0 0.0
      %658 = vmatpush1.msra.mxu0 0.0
      %659 = vmatprep.subr.mxu0 0.0
      %660 = vmatpush1.msra.mxu0 0.0
      %661 = vmatprep.subr.mxu0 0.0
      %662 = vmatpush1.msra.mxu0 0.0
      %663 = vmatprep.subr.mxu0 0.0
      %664 = vmatpush1.msra.mxu0 0.0
      %665 = vmatprep.subr.mxu0 0.0
      %666 = vmatpush1.msra.mxu0 0.0
      %667 = vmatprep.subr.mxu0 0.0
      %668 = vmatpush1.msra.mxu0 0.0
      %669 = vmatprep.subr.mxu0 0.0
      %670 = vmatpush1.msra.mxu0 0.0
      %671 = vmatprep.subr.mxu0 0.0
      %672 = vmatpush1.msra.mxu0 0.0
      %673 = vmatprep.subr.mxu0 0.0
      %674 = vmatpush1.msra.mxu0 0.0
      %675 = vmatprep.subr.mxu0 0.0
      %676 = vmatpush1.msra.mxu0 0.0
      %677 = vmatprep.subr.mxu0 0.0
      %678 = vmatpush1.msra.mxu0 0.0
      %679 = vmatprep.mubr.f32.mxu0 0.0
      %680 = vmatmul.mubr.f32.gmra.mrb[0].mxu0 %v604
      %v681 = vpop.f32.mrb[0].mxu0
      %v682 = vadd.f32 %v585, %v681
      %v683 = vpop.f32.mrb[0].mxu0
      %v684 = vadd.f32 %v585, %v683
      %685 = vmatprep.mubr.f32.mxu0 0.0
      %686 = vmatmul.mubr.f32.gmra.mrb[0].mxu0 %v607
      %v687 = vpop.f32.mrb[0].mxu0
      %v688 = vadd.f32 %v590, %v687
      %v689 = vpop.f32.mrb[0].mxu0
      %v690 = vadd.f32 %v590, %v689
      %691 = vmatprep.mubr.f32.mxu0 0.0
      %692 = vmatmul.mubr.f32.gmra.mrb[0].mxu0 %v610
      %v693 = vpop.f32.mrb[0].mxu0
      %v694 = vadd.f32 %v595, %v693
      %v695 = vpop.f32.mrb[0].mxu0
      %v696 = vadd.f32 %v595, %v695
      %697 = vmatprep.mubr.f32.mxu0 0.0
      %698 = vmatmul.mubr.f32.gmra.mrb[0].mxu0 %v613
      %v699 = vpop.f32.mrb[0].mxu0
      %v700 = vadd.f32 %v600, %v699
      %v701 = vpop.f32.mrb[0].mxu0
      %v702 = vadd.f32 %v600, %v701
      %703 = vdwg.mxu0
      %v704 = vmul.f32 %v557, %v682
      %v705 = vmul.f32 %v557, %v684
      %v706 = vmul.f32 %v557, %v688
      %v707 = vmul.f32 %v557, %v690
      %v708 = vmul.f32 %v557, %v694
      %v709 = vmul.f32 %v557, %v696
      %v710 = vmul.f32 %v557, %v700
      %v711 = vmul.f32 %v557, %v702
      %v712 = vtanh.pop %v704
      %v713 = vtanh.pop %v705
      %v714 = vtanh.pop %v706
      %v715 = vtanh.pop %v707
      %v716 = vtanh.pop %v708
      %v717 = vtanh.pop %v709
      %v718 = vtanh.pop %v710
      %v719 = vtanh.pop %v711
      %v720 = vld [vmem:[%s6] sm:$0xff]
      %v721 = vld [vmem:[%s6 + $0x8] sm:$0xff]
      %v722 = vld [vmem:[%s6 + $0x10] sm:$0xff]
      %v723 = vld [vmem:[%s6 + $0x18] sm:$0xff]
      %v724 = vld [vmem:[%s7] sm:$0xff]
      %v725 = vld [vmem:[%s7 + $0x8] sm:$0xff]
      %v726 = vld [vmem:[%s7 + $0x10] sm:$0xff]
      %v727 = vld [vmem:[%s7 + $0x18] sm:$0xff]
      %729 = vset.pattern.permute.xlu0 0
      %730 = vperm.xlu0 %729, %v724
      %v731 = vpop.permute.xlu0 %730
      %734 = vset.pattern.permute.xlu0 0
      %735 = vperm.xlu0 %734, %v725
      %v736 = vpop.permute.xlu0 %735
      %739 = vset.pattern.permute.xlu0 0
      %740 = vperm.xlu0 %739, %v726
      %v741 = vpop.permute.xlu0 %740
      %744 = vset.pattern.permute.xlu0 0
      %745 = vperm.xlu0 %744, %v727
      %v746 = vpop.permute.xlu0 %745
      %v749 = vsel %vm602, %v720, 0
      %v752 = vsel %vm602, %v721, 0
      %v755 = vsel %vm602, %v722, 0
      %v758 = vsel %vm602, %v723, 0
      %760 = vmatprep.subr.mxu0 %v713
      %761 = vmatpush1.msra.mxu0 %v712
      %762 = vmatprep.subr.mxu0 %v715
      %763 = vmatpush1.msra.mxu0 %v714
      %764 = vmatprep.subr.mxu0 %v717
      %765 = vmatpush1.msra.mxu0 %v716
      %766 = vmatprep.subr.mxu0 %v719
      %767 = vmatpush1.msra.mxu0 %v718
      %768 = vmatprep.subr.mxu0 0.0
      %769 = vmatpush1.msra.mxu0 0.0
      %770 = vmatprep.subr.mxu0 0.0
      %771 = vmatpush1.msra.mxu0 0.0
      %772 = vmatprep.subr.mxu0 0.0
      %773 = vmatpush1.msra.mxu0 0.0
      %774 = vmatprep.subr.mxu0 0.0
      %775 = vmatpush1.msra.mxu0 0.0
      %776 = vmatprep.subr.mxu0 0.0
      %777 = vmatpush1.msra.mxu0 0.0
      %778 = vmatprep.subr.mxu0 0.0
      %779 = vmatpush1.msra.mxu0 0.0
      %780 = vmatprep.subr.mxu0 0.0
      %781 = vmatpush1.msra.mxu0 0.0
      %782 = vmatprep.subr.mxu0 0.0
      %783 = vmatpush1.msra.mxu0 0.0
      %784 = vmatprep.subr.mxu0 0.0
      %785 = vmatpush1.msra.mxu0 0.0
      %786 = vmatprep.subr.mxu0 0.0
      %787 = vmatpush1.msra.mxu0 0.0
      %788 = vmatprep.subr.mxu0 0.0
      %789 = vmatpush1.msra.mxu0 0.0
      %790 = vmatprep.subr.mxu0 0.0
      %791 = vmatpush1.msra.mxu0 0.0
      %792 = vmatprep.subr.mxu0 0.0
      %793 = vmatpush1.msra.mxu0 0.0
      %794 = vmatprep.subr.mxu0 0.0
      %795 = vmatpush1.msra.mxu0 0.0
      %796 = vmatprep.subr.mxu0 0.0
      %797 = vmatpush1.msra.mxu0 0.0
      %798 = vmatprep.subr.mxu0 0.0
      %799 = vmatpush1.msra.mxu0 0.0
      %800 = vmatprep.subr.mxu0 0.0
      %801 = vmatpush1.msra.mxu0 0.0
      %802 = vmatprep.subr.mxu0 0.0
      %803 = vmatpush1.msra.mxu0 0.0
      %804 = vmatprep.subr.mxu0 0.0
      %805 = vmatpush1.msra.mxu0 0.0
      %806 = vmatprep.subr.mxu0 0.0
      %807 = vmatpush1.msra.mxu0 0.0
      %808 = vmatprep.subr.mxu0 0.0
      %809 = vmatpush1.msra.mxu0 0.0
      %810 = vmatprep.subr.mxu0 0.0
      %811 = vmatpush1.msra.mxu0 0.0
      %812 = vmatprep.subr.mxu0 0.0
      %813 = vmatpush1.msra.mxu0 0.0
      %814 = vmatprep.subr.mxu0 0.0
      %815 = vmatpush1.msra.mxu0 0.0
      %816 = vmatprep.subr.mxu0 0.0
      %817 = vmatpush1.msra.mxu0 0.0
      %818 = vmatprep.subr.mxu0 0.0
      %819 = vmatpush1.msra.mxu0 0.0
      %820 = vmatprep.subr.mxu0 0.0
      %821 = vmatpush1.msra.mxu0 0.0
      %822 = vmatprep.subr.mxu0 0.0
      %823 = vmatpush1.msra.mxu0 0.0
      %824 = vmatprep.mubr.f32.mxu0 0.0
      %825 = vmatmul.mubr.f32.gmra.mrb[0].mxu0 %v749
      %v826 = vpop.f32.mrb[0].mxu0
      %v827 = vadd.f32 %v731, %v826
      %v828 = vpop.f32.mrb[0].mxu0
      %v829 = vadd.f32 %v731, %v828
      %830 = vmatprep.mubr.f32.mxu0 0.0
      %831 = vmatmul.mubr.f32.gmra.mrb[0].mxu0 %v752
      %v832 = vpop.f32.mrb[0].mxu0
      %v833 = vadd.f32 %v736, %v832
      %v834 = vpop.f32.mrb[0].mxu0
      %v835 = vadd.f32 %v736, %v834
      %836 = vmatprep.mubr.f32.mxu0 0.0
      %837 = vmatmul.mubr.f32.gmra.mrb[0].mxu0 %v755
      %v838 = vpop.f32.mrb[0].mxu0
      %v839 = vadd.f32 %v741, %v838
      %v840 = vpop.f32.mrb[0].mxu0
      %v841 = vadd.f32 %v741, %v840
      %842 = vmatprep.mubr.f32.mxu0 0.0
      %843 = vmatmul.mubr.f32.gmra.mrb[0].mxu0 %v758
      %v844 = vpop.f32.mrb[0].mxu0
      %v845 = vadd.f32 %v746, %v844
      %v846 = vpop.f32.mrb[0].mxu0
      %v847 = vadd.f32 %v746, %v846
      %848 = vdwg.mxu0
      %v849 = vmul.f32 %v557, %v827
      %v850 = vmul.f32 %v557, %v829
      %v851 = vmul.f32 %v557, %v833
      %v852 = vmul.f32 %v557, %v835
      %v853 = vmul.f32 %v557, %v839
      %v854 = vmul.f32 %v557, %v841
      %v855 = vmul.f32 %v557, %v845
      %v856 = vmul.f32 %v557, %v847
      %v857 = vtanh.pop %v849
      %v858 = vtanh.pop %v850
      %v859 = vtanh.pop %v851
      %v860 = vtanh.pop %v852
      %v861 = vtanh.pop %v853
      %v862 = vtanh.pop %v854
      %v863 = vtanh.pop %v855
      %v864 = vtanh.pop %v856
      %v865 = vld [vmem:[%s8] sm:$0xff]
      %v866 = vld [vmem:[%s8 + $0x8] sm:$0xff]
      %v867 = vld [vmem:[%s8 + $0x10] sm:$0xff]
      %v868 = vld [vmem:[%s8 + $0x18] sm:$0xff]
      %v869 = vld [vmem:[%s9] sm:$0xff]
      %v870 = vld [vmem:[%s9 + $0x8] sm:$0xff]
      %v871 = vld [vmem:[%s9 + $0x10] sm:$0xff]
      %v872 = vld [vmem:[%s9 + $0x18] sm:$0xff]
      %874 = vset.pattern.permute.xlu0 0
      %875 = vperm.xlu0 %874, %v869
      %v876 = vpop.permute.xlu0 %875
      %879 = vset.pattern.permute.xlu0 0
      %880 = vperm.xlu0 %879, %v870
      %v881 = vpop.permute.xlu0 %880
      %884 = vset.pattern.permute.xlu0 0
      %885 = vperm.xlu0 %884, %v871
      %v886 = vpop.permute.xlu0 %885
      %889 = vset.pattern.permute.xlu0 0
      %890 = vperm.xlu0 %889, %v872
      %v891 = vpop.permute.xlu0 %890
      %v894 = vsel %vm602, %v865, 0
      %v897 = vsel %vm602, %v866, 0
      %v900 = vsel %vm602, %v867, 0
      %v903 = vsel %vm602, %v868, 0
      %905 = vmatprep.subr.mxu0 %v858
      %906 = vmatpush1.msra.mxu0 %v857
      %907 = vmatprep.subr.mxu0 %v860
      %908 = vmatpush1.msra.mxu0 %v859
      %909 = vmatprep.subr.mxu0 %v862
      %910 = vmatpush1.msra.mxu0 %v861
      %911 = vmatprep.subr.mxu0 %v864
      %912 = vmatpush1.msra.mxu0 %v863
      %913 = vmatprep.subr.mxu0 0.0
      %914 = vmatpush1.msra.mxu0 0.0
      %915 = vmatprep.subr.mxu0 0.0
      %916 = vmatpush1.msra.mxu0 0.0
      %917 = vmatprep.subr.mxu0 0.0
      %918 = vmatpush1.msra.mxu0 0.0
      %919 = vmatprep.subr.mxu0 0.0
      %920 = vmatpush1.msra.mxu0 0.0
      %921 = vmatprep.subr.mxu0 0.0
      %922 = vmatpush1.msra.mxu0 0.0
      %923 = vmatprep.subr.mxu0 0.0
      %924 = vmatpush1.msra.mxu0 0.0
      %925 = vmatprep.subr.mxu0 0.0
      %926 = vmatpush1.msra.mxu0 0.0
      %927 = vmatprep.subr.mxu0 0.0
      %928 = vmatpush1.msra.mxu0 0.0
      %929 = vmatprep.subr.mxu0 0.0
      %930 = vmatpush1.msra.mxu0 0.0
      %931 = vmatprep.subr.mxu0 0.0
      %932 = vmatpush1.msra.mxu0 0.0
      %933 = vmatprep.subr.mxu0 0.0
      %934 = vmatpush1.msra.mxu0 0.0
      %935 = vmatprep.subr.mxu0 0.0
      %936 = vmatpush1.msra.mxu0 0.0
      %937 = vmatprep.subr.mxu0 0.0
      %938 = vmatpush1.msra.mxu0 0.0
      %939 = vmatprep.subr.mxu0 0.0
      %940 = vmatpush1.msra.mxu0 0.0
      %941 = vmatprep.subr.mxu0 0.0
      %942 = vmatpush1.msra.mxu0 0.0
      %943 = vmatprep.subr.mxu0 0.0
      %944 = vmatpush1.msra.mxu0 0.0
      %945 = vmatprep.subr.mxu0 0.0
      %946 = vmatpush1.msra.mxu0 0.0
      %947 = vmatprep.subr.mxu0 0.0
      %948 = vmatpush1.msra.mxu0 0.0
      %949 = vmatprep.subr.mxu0 0.0
      %950 = vmatpush1.msra.mxu0 0.0
      %951 = vmatprep.subr.mxu0 0.0
      %952 = vmatpush1.msra.mxu0 0.0
      %953 = vmatprep.subr.mxu0 0.0
      %954 = vmatpush1.msra.mxu0 0.0
      %955 = vmatprep.subr.mxu0 0.0
      %956 = vmatpush1.msra.mxu0 0.0
      %957 = vmatprep.subr.mxu0 0.0
      %958 = vmatpush1.msra.mxu0 0.0
      %959 = vmatprep.subr.mxu0 0.0
      %960 = vmatpush1.msra.mxu0 0.0
      %961 = vmatprep.subr.mxu0 0.0
      %962 = vmatpush1.msra.mxu0 0.0
      %963 = vmatprep.subr.mxu0 0.0
      %964 = vmatpush1.msra.mxu0 0.0
      %965 = vmatprep.subr.mxu0 0.0
      %966 = vmatpush1.msra.mxu0 0.0
      %967 = vmatprep.subr.mxu0 0.0
      %968 = vmatpush1.msra.mxu0 0.0
      %969 = vmatprep.mubr.f32.mxu0 0.0
      %970 = vmatmul.mubr.f32.gmra.mrb[0].mxu0 %v894
      %v971 = vpop.f32.mrb[0].mxu0
      %v972 = vadd.f32 %v876, %v971
      %v973 = vpop.f32.mrb[0].mxu0
      %v974 = vadd.f32 %v876, %v973
      %975 = vmatprep.mubr.f32.mxu0 0.0
      %976 = vmatmul.mubr.f32.gmra.mrb[0].mxu0 %v897
      %v977 = vpop.f32.mrb[0].mxu0
      %v978 = vadd.f32 %v881, %v977
      %v979 = vpop.f32.mrb[0].mxu0
      %v980 = vadd.f32 %v881, %v979
      %981 = vmatprep.mubr.f32.mxu0 0.0
      %982 = vmatmul.mubr.f32.gmra.mrb[0].mxu0 %v900
      %v983 = vpop.f32.mrb[0].mxu0
      %v984 = vadd.f32 %v886, %v983
      %v985 = vpop.f32.mrb[0].mxu0
      %v986 = vadd.f32 %v886, %v985
      %987 = vmatprep.mubr.f32.mxu0 0.0
      %988 = vmatmul.mubr.f32.gmra.mrb[0].mxu0 %v903
      %v989 = vpop.f32.mrb[0].mxu0
      %v990 = vadd.f32 %v891, %v989
      %v991 = vpop.f32.mrb[0].mxu0
      %v992 = vadd.f32 %v891, %v991
      %993 = vdwg.mxu0
      %v994 = vmul.f32 %v557, %v972
      %v995 = vmul.f32 %v557, %v974
      %v996 = vmul.f32 %v557, %v978
      %v997 = vmul.f32 %v557, %v980
      %v998 = vmul.f32 %v557, %v984
      %v999 = vmul.f32 %v557, %v986
      %v1000 = vmul.f32 %v557, %v990
      %v1001 = vmul.f32 %v557, %v992
      %v1002 = vtanh.pop %v994
      %v1003 = vtanh.pop %v995
      %v1004 = vtanh.pop %v996
      %v1005 = vtanh.pop %v997
      %v1006 = vtanh.pop %v998
      %v1007 = vtanh.pop %v999
      %v1008 = vtanh.pop %v1000
      %v1009 = vtanh.pop %v1001
      %v1010 = vld [vmem:[%s10] sm:$0xf]
      %v1011 = vld [vmem:[%s11] sm:$0xf]
      %1013 = vset.pattern.permute.xlu0 0
      %1014 = vperm.xlu0 %1013, %v1011
      %v1015 = vpop.permute.xlu0 %1014
      %v1018 = vsel %vm602, %v1010, 0
      %1020 = vmatprep.subr.mxu0 %v1003
      %1021 = vmatpush1.msra.mxu0 %v1002
      %1022 = vmatprep.subr.mxu0 %v1005
      %1023 = vmatpush1.msra.mxu0 %v1004
      %1024 = vmatprep.subr.mxu0 %v1007
      %1025 = vmatpush1.msra.mxu0 %v1006
      %1026 = vmatprep.subr.mxu0 %v1009
      %1027 = vmatpush1.msra.mxu0 %v1008
      %1028 = vmatprep.subr.mxu0 0.0
      %1029 = vmatpush1.msra.mxu0 0.0
      %1030 = vmatprep.subr.mxu0 0.0
      %1031 = vmatpush1.msra.mxu0 0.0
      %1032 = vmatprep.subr.mxu0 0.0
      %1033 = vmatpush1.msra.mxu0 0.0
      %1034 = vmatprep.subr.mxu0 0.0
      %1035 = vmatpush1.msra.mxu0 0.0
      %1036 = vmatprep.subr.mxu0 0.0
      %1037 = vmatpush1.msra.mxu0 0.0
      %1038 = vmatprep.subr.mxu0 0.0
      %1039 = vmatpush1.msra.mxu0 0.0
      %1040 = vmatprep.subr.mxu0 0.0
      %1041 = vmatpush1.msra.mxu0 0.0
      %1042 = vmatprep.subr.mxu0 0.0
      %1043 = vmatpush1.msra.mxu0 0.0
      %1044 = vmatprep.subr.mxu0 0.0
      %1045 = vmatpush1.msra.mxu0 0.0
      %1046 = vmatprep.subr.mxu0 0.0
      %1047 = vmatpush1.msra.mxu0 0.0
      %1048 = vmatprep.subr.mxu0 0.0
      %1049 = vmatpush1.msra.mxu0 0.0
      %1050 = vmatprep.subr.mxu0 0.0
      %1051 = vmatpush1.msra.mxu0 0.0
      %1052 = vmatprep.subr.mxu0 0.0
      %1053 = vmatpush1.msra.mxu0 0.0
      %1054 = vmatprep.subr.mxu0 0.0
      %1055 = vmatpush1.msra.mxu0 0.0
      %1056 = vmatprep.subr.mxu0 0.0
      %1057 = vmatpush1.msra.mxu0 0.0
      %1058 = vmatprep.subr.mxu0 0.0
      %1059 = vmatpush1.msra.mxu0 0.0
      %1060 = vmatprep.subr.mxu0 0.0
      %1061 = vmatpush1.msra.mxu0 0.0
      %1062 = vmatprep.subr.mxu0 0.0
      %1063 = vmatpush1.msra.mxu0 0.0
      %1064 = vmatprep.subr.mxu0 0.0
      %1065 = vmatpush1.msra.mxu0 0.0
      %1066 = vmatprep.subr.mxu0 0.0
      %1067 = vmatpush1.msra.mxu0 0.0
      %1068 = vmatprep.subr.mxu0 0.0
      %1069 = vmatpush1.msra.mxu0 0.0
      %1070 = vmatprep.subr.mxu0 0.0
      %1071 = vmatpush1.msra.mxu0 0.0
      %1072 = vmatprep.subr.mxu0 0.0
      %1073 = vmatpush1.msra.mxu0 0.0
      %1074 = vmatprep.subr.mxu0 0.0
      %1075 = vmatpush1.msra.mxu0 0.0
      %1076 = vmatprep.subr.mxu0 0.0
      %1077 = vmatpush1.msra.mxu0 0.0
      %1078 = vmatprep.subr.mxu0 0.0
      %1079 = vmatpush1.msra.mxu0 0.0
      %1080 = vmatprep.subr.mxu0 0.0
      %1081 = vmatpush1.msra.mxu0 0.0
      %1082 = vmatprep.subr.mxu0 0.0
      %1083 = vmatpush1.msra.mxu0 0.0
      %1084 = vmatprep.mubr.f32.mxu0 0.0
      %1085 = vmatmul.mubr.f32.gmra.mrb[0].mxu0 %v1018
      %v1086 = vpop.f32.mrb[0].mxu0
      %v1087 = vadd.f32 %v1015, %v1086
      %v1088 = vpop.f32.mrb[0].mxu0
      %v1089 = vadd.f32 %v1015, %v1088
      %1090 = vdwg.mxu0
      %v1091 = vmul.f32 %v557, %v1087
      %v1092 = vmul.f32 %v557, %v1089
      %v1095 = vcombine.low %v1091, %v1092
      %1097 = vst [vmem:[%s416] sm:$0xff] %v1095
      %s1098 = smul.u32 2, %s24
      %p1099 = scmp.lt.s32.totalorder %s1098, 3
      %s1100 = scalar_select %p1099, %s1098, 3
      %s1101 = smul.addr %s1100, 4
      %s1102 = scalar_lea.vmem %s12, %s1101
      // Predicated region
      $region69: #{particular_forward.1} parent=67 // pred_check
        %p1103 = pneg %p299
      $region70: #{particular_forward.1} parent=67 // pred_check_branch
        %1105 = sbr.rel (%p1103) target = $region72
      $region71: #{particular_forward.1} parent=67 // pred_region
        %s1106 = smul.u32 2, %s24
      $region72: #{particular_forward.1} parent=67 // pred_fallthru
        _
    $region68: #{particular_forward.1} parent=5 // pred_fallthru
      _
    %p1107 = scmp.le.s32.totalorder 2, %s19
    // Predicated region
    $region73: #{particular_forward.1} parent=5 // pred_check
      %p1108 = pneg %p1107
    $region74: #{particular_forward.1} parent=5 // pred_check_branch
      %1110 = sbr.rel (%p1108) target = $region76
    $region75: #{particular_forward.1} parent=5 // pred_region
      %s1111 = ssub.s32 %s19, 2
      // Predicated region
      $region77: #{particular_forward.1} parent=75 // pred_check
        %p1112 = pneg %p305
      $region78: #{particular_forward.1} parent=75 // pred_check_branch
        %1114 = sbr.rel (%p1112) target = $region80
      $region79: #{particular_forward.1} parent=75 // pred_region
        %s1115 = smul.u32 2, %s25
        %p1116 = scmp.lt.s32.totalorder %s1115, 3
        %s1117 = scalar_select %p1116, %s1115, 3
        %s1118 = smul.addr %s1117, 4
        %s1119 = scalar_lea.vmem %s12, %s1118
      $region80: #{particular_forward.1} parent=75 // pred_fallthru
        _
    $region76: #{particular_forward.1} parent=5 // pred_fallthru
      _
  $region6: #{particular_forward.1} parent=0 // loop_footer
    %s23 = sadd.s32 1, %s19
  $region7: #{particular_forward.1} parent=0 // loop_footer_branch
    %18 = sbr.rel target = $region3
  $region8: #{particular_forward.1} parent=0 // loop_exit
    _

</llo_original>
